<compile_context>
chip_gen: v6e
topology: v6e:2x2x1
jax: 0.10.0
libtpu: 0.0.40
codegen_flags: <defaults>
</compile_context>

<pallas_src>
import math

import jax
import jax.numpy as jnp
from jax import lax
from jax.experimental import pallas as pl
from jax.experimental.pallas import tpu as pltpu

_LANES = 128
_SUBLANES = 8


def eval_brdf_kernel(params_ref, wi_ref, wo_ref, n_ref, brdf_ref, pdf_ref):
    # --- scalar material parameters (SMEM) ------------------------------
    kd0 = params_ref[0]
    kd1 = params_ref[1]
    kd2 = params_ref[2]
    ks0 = params_ref[3]
    ks1 = params_ref[4]
    ks2 = params_ref[5]
    a2 = params_ref[6]           # roughness**4
    k = params_ref[7]            # (roughness + 1)**2 / 8
    one_minus_k = 1.0 - k
    inv_pi = 1.0 / math.pi

    # --- dense (rows, 128) per-sample slabs ------------------------------
    wi0, wi1, wi2 = wi_ref[0], wi_ref[1], wi_ref[2]
    wo0, wo1, wo2 = wo_ref[0], wo_ref[1], wo_ref[2]
    n0, n1, n2 = n_ref[0], n_ref[1], n_ref[2]

    NoL = wi0 * n0 + wi1 * n1 + wi2 * n2
    NoV = wo0 * n0 + wo1 * n1 + wo2 * n2
    valid = jnp.logical_and(NoL > 0.0, NoV > 0.0).astype(jnp.float32)

    # h = normalize(wi + wo)   (torch F.normalize: x / max(||x||, 1e-12))
    h0 = wi0 + wo0
    h1 = wi1 + wo1
    h2 = wi2 + wo2
    inv_hn = lax.rsqrt(jnp.maximum(h0 * h0 + h1 * h1 + h2 * h2, 1e-24))
    h0 = h0 * inv_hn
    h1 = h1 * inv_hn
    h2 = h2 * inv_hn

    NoL = jnp.maximum(NoL, 0.0)
    NoV = jnp.maximum(NoV, 0.0)
    VoH = jnp.maximum(wo0 * h0 + wo1 * h1 + wo2 * h2, 0.0)
    NoH = jnp.maximum(n0 * h0 + n1 * h1 + n2 * h2, 0.0)

    # D_GGX
    d_denom = NoH * NoH * (a2 - 1.0) + 1.0
    inv_dd = pl.reciprocal(d_denom, approx=True)
    D = (a2 * inv_pi) * inv_dd * inv_dd

    # G_Smith (Schlick-GGX, direct-lighting k)
    g1_v = NoV * pl.reciprocal(NoV * one_minus_k + k, approx=True)
    g1_l = NoL * pl.reciprocal(NoL * one_minus_k + k, approx=True)
    G = g1_v * g1_l

    # fresnelSchlick: (1 - VoH)**5 expanded as three multiplies
    omv = 1.0 - VoH
    omv2 = omv * omv
    omv5 = omv2 * omv2 * omv

    spec_common = D * G * pl.reciprocal(4.0 * NoV + 1e-4, approx=True) * valid
    diff_common = NoL * inv_pi * valid

    brdf_ref[0] = kd0 * diff_common + (ks0 + (1.0 - ks0) * omv5) * spec_common
    brdf_ref[1] = kd1 * diff_common + (ks1 + (1.0 - ks1) * omv5) * spec_common
    brdf_ref[2] = kd2 * diff_common + (ks2 + (1.0 - ks2) * omv5) * spec_common

    pdf_spec = D * pl.reciprocal(
        4.0 * jnp.maximum(VoH, 1e-4) * jnp.maximum(NoH, 1e-4), approx=True)
    pdf_ref[...] = (0.5 * pdf_spec + 0.5 * NoV * inv_pi) * valid


def pbr_brdf_forward(wi, wo, normal, albedo, roughness, metallic,
                     block_rows=64):
    """wi, wo, normal: (B, 3) float32.  Returns (brdf (B,3), pdf (B,1))."""
    B = wi.shape[0]
    S = pl.cdiv(B, _LANES)                       # number of 128-lane rows
    # Aim for >= 2 grid steps when the problem is large (v7x megacore), cap
    # block size at block_rows*128 batch elements per step, keep rows a
    # multiple of 8 so the (rows, 128) block is sublane/lane aligned.
    rows = max(1, min(block_rows, pl.cdiv(S, 2)))
    rows = pl.cdiv(rows, _SUBLANES) * _SUBLANES
    grid = pl.cdiv(S, rows)
    S_pad = grid * rows
    B_pad = S_pad * _LANES

    def pack(x):
        xt = jnp.asarray(x, jnp.float32).T                  # (3, B)
        xt = jnp.pad(xt, ((0, 0), (0, B_pad - B)))
        return xt.reshape(3, S_pad, _LANES)

    wi_p, wo_p, n_p = pack(wi), pack(wo), pack(normal)

    albedo = jnp.asarray(albedo, jnp.float32).reshape(3)
    roughness = jnp.asarray(roughness, jnp.float32).reshape(())
    metallic = jnp.asarray(metallic, jnp.float32).reshape(())
    kd = albedo * (1.0 - metallic)
    ks = 0.04 * (1.0 - metallic) + albedo * metallic
    a2 = roughness ** 4
    kk = (roughness + 1.0) ** 2 / 8.0
    params = jnp.concatenate([kd, ks, jnp.stack([a2, kk])]).astype(jnp.float32)

    brdf_p, pdf_p = pl.pallas_call(
        eval_brdf_kernel,
        out_shape=(jax.ShapeDtypeStruct((3, S_pad, _LANES), jnp.float32),
                   jax.ShapeDtypeStruct((S_pad, _LANES), jnp.float32)),
        grid=(grid,),
        in_specs=[
            pl.BlockSpec(memory_space=pltpu.MemorySpace.SMEM),   # params (8,)
            pl.BlockSpec((3, rows, _LANES), lambda i: (0, i, 0)),  # wi
            pl.BlockSpec((3, rows, _LANES), lambda i: (0, i, 0)),  # wo
            pl.BlockSpec((3, rows, _LANES), lambda i: (0, i, 0)),  # normal
        ],
        out_specs=(
            pl.BlockSpec((3, rows, _LANES), lambda i: (0, i, 0)),  # brdf
            pl.BlockSpec((rows, _LANES), lambda i: (i, 0)),        # pdf (dense)
        ),
        compiler_params=pltpu.CompilerParams(
            dimension_semantics=("parallel",)),
    )(params, wi_p, wo_p, n_p)

    brdf = brdf_p.reshape(3, B_pad)[:, :B].T                 # (B, 3)
    pdf = pdf_p.reshape(B_pad)[:B].reshape(B, 1)              # (B, 1)
    return brdf, pdf


def _reference_jax(wi, wo, normal, albedo, roughness, metallic):
    """Pure-JAX reference mirroring the PyTorch eval_brdf semantics."""
    albedo = albedo.reshape(1, 3)
    roughness = roughness.reshape(1, 1)
    metallic = metallic.reshape(1, 1)
    NoL = jnp.sum(wi * normal, -1, keepdims=True)
    NoV = jnp.sum(wo * normal, -1, keepdims=True)
    valid = (NoL > 0) & (NoV > 0)
    h = (wi + wo)
    h = h / jnp.maximum(jnp.linalg.norm(h, axis=-1, keepdims=True), 1e-12)
    NoL, NoV = jnp.maximum(NoL, 0.), jnp.maximum(NoV, 0.)
    VoH = jnp.maximum(jnp.sum(wo * h, -1, keepdims=True), 0.)
    NoH = jnp.maximum(jnp.sum(normal * h, -1, keepdims=True), 0.)
    k_d = albedo * (1 - metallic)
    k_s = 0.04 * (1 - metallic) + albedo * metallic
    diffuse = k_d * NoL / math.pi
    a2 = roughness ** 4
    D = a2 / (math.pi * (NoH * NoH * (a2 - 1) + 1) ** 2)
    k = (roughness + 1) ** 2 / 8.0
    G = (NoV / (NoV * (1 - k) + k)) * (NoL / (NoL * (1 - k) + k))
    F = k_s + (1 - k_s) * (1 - VoH) ** 5
    specular = F * D * G / (4 * NoV + 1e-4)
    brdf = diffuse + specular
    pdf = 0.5 * D / (4 * jnp.maximum(VoH, 1e-4) * jnp.maximum(NoH, 1e-4)) \
        + 0.5 * NoV / math.pi
    return valid * brdf, valid * pdf


if __name__ == "__main__":
    key = jax.random.PRNGKey(0)
    B = 200   # deliberately not a multiple of 128 to exercise the padded path
    k1, k2, k3 = jax.random.split(key, 3)

    def rand_dirs(k):
        v = jax.random.normal(k, (B, 3), jnp.float32)
        return v / jnp.linalg.norm(v, axis=-1, keepdims=True)

    wi = rand_dirs(k1)
    wo = rand_dirs(k2)
    normal = rand_dirs(k3)

    # Parameters as in PBRBRDF.__init__ defaults (deterministic).
    albedo = jnp.ones((1, 3), jnp.float32)
    roughness = jnp.full((1, 1), 0.2, jnp.float32)
    metallic = jnp.full((1, 1), 0.5, jnp.float32)

    brdf, pdf = pbr_brdf_forward(wi, wo, normal, albedo, roughness, metallic)
    jax.block_until_ready((brdf, pdf))

    brdf_ref, pdf_ref = _reference_jax(wi, wo, normal, albedo, roughness, metallic)
    assert brdf.shape == (B, 3) and pdf.shape == (B, 1)
    # Loose-ish tolerance: the kernel uses EUP approximate reciprocals.
    assert jnp.allclose(brdf, brdf_ref, rtol=5e-3, atol=1e-4)
    assert jnp.allclose(pdf, pdf_ref, rtol=5e-3, atol=1e-4)

    print("KERNEL_OK")
</pallas_src>

<mosaic_0001>
module attributes {stable_mosaic.version = 11 : i64} {
  func.func @eval_brdf_kernel(%arg0: i32, %arg1: memref<8xf32, #tpu.memory_space<smem>>, %arg2: memref<3x8x128xf32, #tpu.memory_space<vmem>>, %arg3: memref<3x8x128xf32, #tpu.memory_space<vmem>>, %arg4: memref<3x8x128xf32, #tpu.memory_space<vmem>>, %arg5: memref<3x8x128xf32, #tpu.memory_space<vmem>>, %arg6: memref<8x128xf32, #tpu.memory_space<vmem>>) attributes {dimension_semantics = [#tpu.dimension_semantics<parallel>], iteration_bounds = array<i64: 1>, scalar_prefetch = 0 : i64, scratch_operands = 0 : i64, tpu.core_type = #tpu.core_type<tc>, window_params = [{transform_indices = @transform_0, window_bounds = array<i64: 8>}, {transform_indices = @transform_1, window_bounds = array<i64: 3, 8, 128>}, {transform_indices = @transform_2, window_bounds = array<i64: 3, 8, 128>}, {transform_indices = @transform_3, window_bounds = array<i64: 3, 8, 128>}, {transform_indices = @transform_4, window_bounds = array<i64: 3, 8, 128>}, {transform_indices = @transform_5, window_bounds = array<i64: 8, 128>}]} {
    %c0 = arith.constant 0 : index
    %0 = memref.load %arg1[%c0] : memref<8xf32, #tpu.memory_space<smem>>
    %c1 = arith.constant 1 : index
    %1 = memref.load %arg1[%c1] : memref<8xf32, #tpu.memory_space<smem>>
    %c2 = arith.constant 2 : index
    %2 = memref.load %arg1[%c2] : memref<8xf32, #tpu.memory_space<smem>>
    %c3 = arith.constant 3 : index
    %3 = memref.load %arg1[%c3] : memref<8xf32, #tpu.memory_space<smem>>
    %c4 = arith.constant 4 : index
    %4 = memref.load %arg1[%c4] : memref<8xf32, #tpu.memory_space<smem>>
    %c5 = arith.constant 5 : index
    %5 = memref.load %arg1[%c5] : memref<8xf32, #tpu.memory_space<smem>>
    %c6 = arith.constant 6 : index
    %6 = memref.load %arg1[%c6] : memref<8xf32, #tpu.memory_space<smem>>
    %c7 = arith.constant 7 : index
    %7 = memref.load %arg1[%c7] : memref<8xf32, #tpu.memory_space<smem>>
    %cst = arith.constant 1.000000e+00 : f32
    %8 = arith.subf %cst, %7 : f32
    %c0_0 = arith.constant 0 : index
    %c0_1 = arith.constant 0 : index
    %c0_2 = arith.constant 0 : index
    %9 = vector.load %arg2[%c0_0, %c0_1, %c0_2] : memref<3x8x128xf32, #tpu.memory_space<vmem>>, vector<1x8x128xf32>
    %10 = vector.shape_cast %9 : vector<1x8x128xf32> to vector<8x128xf32>
    %c1_3 = arith.constant 1 : index
    %c0_4 = arith.constant 0 : index
    %c0_5 = arith.constant 0 : index
    %11 = vector.load %arg2[%c1_3, %c0_4, %c0_5] : memref<3x8x128xf32, #tpu.memory_space<vmem>>, vector<1x8x128xf32>
    %12 = vector.shape_cast %11 : vector<1x8x128xf32> to vector<8x128xf32>
    %c2_6 = arith.constant 2 : index
    %c0_7 = arith.constant 0 : index
    %c0_8 = arith.constant 0 : index
    %13 = vector.load %arg2[%c2_6, %c0_7, %c0_8] : memref<3x8x128xf32, #tpu.memory_space<vmem>>, vector<1x8x128xf32>
    %14 = vector.shape_cast %13 : vector<1x8x128xf32> to vector<8x128xf32>
    %c0_9 = arith.constant 0 : index
    %c0_10 = arith.constant 0 : index
    %c0_11 = arith.constant 0 : index
    %15 = vector.load %arg3[%c0_9, %c0_10, %c0_11] : memref<3x8x128xf32, #tpu.memory_space<vmem>>, vector<1x8x128xf32>
    %16 = vector.shape_cast %15 : vector<1x8x128xf32> to vector<8x128xf32>
    %c1_12 = arith.constant 1 : index
    %c0_13 = arith.constant 0 : index
    %c0_14 = arith.constant 0 : index
    %17 = vector.load %arg3[%c1_12, %c0_13, %c0_14] : memref<3x8x128xf32, #tpu.memory_space<vmem>>, vector<1x8x128xf32>
    %18 = vector.shape_cast %17 : vector<1x8x128xf32> to vector<8x128xf32>
    %c2_15 = arith.constant 2 : index
    %c0_16 = arith.constant 0 : index
    %c0_17 = arith.constant 0 : index
    %19 = vector.load %arg3[%c2_15, %c0_16, %c0_17] : memref<3x8x128xf32, #tpu.memory_space<vmem>>, vector<1x8x128xf32>
    %20 = vector.shape_cast %19 : vector<1x8x128xf32> to vector<8x128xf32>
    %c0_18 = arith.constant 0 : index
    %c0_19 = arith.constant 0 : index
    %c0_20 = arith.constant 0 : index
    %21 = vector.load %arg4[%c0_18, %c0_19, %c0_20] : memref<3x8x128xf32, #tpu.memory_space<vmem>>, vector<1x8x128xf32>
    %22 = vector.shape_cast %21 : vector<1x8x128xf32> to vector<8x128xf32>
    %c1_21 = arith.constant 1 : index
    %c0_22 = arith.constant 0 : index
    %c0_23 = arith.constant 0 : index
    %23 = vector.load %arg4[%c1_21, %c0_22, %c0_23] : memref<3x8x128xf32, #tpu.memory_space<vmem>>, vector<1x8x128xf32>
    %24 = vector.shape_cast %23 : vector<1x8x128xf32> to vector<8x128xf32>
    %c2_24 = arith.constant 2 : index
    %c0_25 = arith.constant 0 : index
    %c0_26 = arith.constant 0 : index
    %25 = vector.load %arg4[%c2_24, %c0_25, %c0_26] : memref<3x8x128xf32, #tpu.memory_space<vmem>>, vector<1x8x128xf32>
    %26 = vector.shape_cast %25 : vector<1x8x128xf32> to vector<8x128xf32>
    %27 = arith.mulf %10, %22 : vector<8x128xf32>
    %28 = arith.mulf %12, %24 : vector<8x128xf32>
    %29 = arith.addf %27, %28 : vector<8x128xf32>
    %30 = arith.mulf %14, %26 : vector<8x128xf32>
    %31 = arith.addf %29, %30 : vector<8x128xf32>
    %32 = arith.mulf %16, %22 : vector<8x128xf32>
    %33 = arith.mulf %18, %24 : vector<8x128xf32>
    %34 = arith.addf %32, %33 : vector<8x128xf32>
    %35 = arith.mulf %20, %26 : vector<8x128xf32>
    %36 = arith.addf %34, %35 : vector<8x128xf32>
    %cst_27 = arith.constant 0.000000e+00 : f32
    %37 = vector.broadcast %cst_27 : f32 to vector<8x128xf32>
    %38 = arith.cmpf ogt, %31, %37 : vector<8x128xf32>
    %cst_28 = arith.constant 0.000000e+00 : f32
    %39 = vector.broadcast %cst_28 : f32 to vector<8x128xf32>
    %40 = arith.cmpf ogt, %36, %39 : vector<8x128xf32>
    %41 = arith.andi %38, %40 : vector<8x128xi1>
    %42 = arith.extui %41 : vector<8x128xi1> to vector<8x128xi32>
    %43 = arith.sitofp %42 : vector<8x128xi32> to vector<8x128xf32>
    %44 = arith.addf %10, %16 : vector<8x128xf32>
    %45 = arith.addf %12, %18 : vector<8x128xf32>
    %46 = arith.addf %14, %20 : vector<8x128xf32>
    %47 = arith.mulf %44, %44 : vector<8x128xf32>
    %48 = arith.mulf %45, %45 : vector<8x128xf32>
    %49 = arith.addf %47, %48 : vector<8x128xf32>
    %50 = arith.mulf %46, %46 : vector<8x128xf32>
    %51 = arith.addf %49, %50 : vector<8x128xf32>
    %cst_29 = arith.constant 1.000000e-24 : f32
    %52 = vector.broadcast %cst_29 : f32 to vector<8x128xf32>
    %53 = arith.maximumf %51, %52 : vector<8x128xf32>
    %54 = math.rsqrt %53 : vector<8x128xf32>
    %55 = arith.mulf %44, %54 : vector<8x128xf32>
    %56 = arith.mulf %45, %54 : vector<8x128xf32>
    %57 = arith.mulf %46, %54 : vector<8x128xf32>
    %cst_30 = arith.constant 0.000000e+00 : f32
    %58 = vector.broadcast %cst_30 : f32 to vector<8x128xf32>
    %59 = arith.maximumf %31, %58 : vector<8x128xf32>
    %cst_31 = arith.constant 0.000000e+00 : f32
    %60 = vector.broadcast %cst_31 : f32 to vector<8x128xf32>
    %61 = arith.maximumf %36, %60 : vector<8x128xf32>
    %62 = arith.mulf %16, %55 : vector<8x128xf32>
    %63 = arith.mulf %18, %56 : vector<8x128xf32>
    %64 = arith.addf %62, %63 : vector<8x128xf32>
    %65 = arith.mulf %20, %57 : vector<8x128xf32>
    %66 = arith.addf %64, %65 : vector<8x128xf32>
    %cst_32 = arith.constant 0.000000e+00 : f32
    %67 = vector.broadcast %cst_32 : f32 to vector<8x128xf32>
    %68 = arith.maximumf %66, %67 : vector<8x128xf32>
    %69 = arith.mulf %22, %55 : vector<8x128xf32>
    %70 = arith.mulf %24, %56 : vector<8x128xf32>
    %71 = arith.addf %69, %70 : vector<8x128xf32>
    %72 = arith.mulf %26, %57 : vector<8x128xf32>
    %73 = arith.addf %71, %72 : vector<8x128xf32>
    %cst_33 = arith.constant 0.000000e+00 : f32
    %74 = vector.broadcast %cst_33 : f32 to vector<8x128xf32>
    %75 = arith.maximumf %73, %74 : vector<8x128xf32>
    %76 = arith.mulf %75, %75 : vector<8x128xf32>
    %cst_34 = arith.constant 1.000000e+00 : f32
    %77 = arith.subf %6, %cst_34 : f32
    %78 = vector.broadcast %77 : f32 to vector<8x128xf32>
    %79 = arith.mulf %76, %78 : vector<8x128xf32>
    %cst_35 = arith.constant 1.000000e+00 : f32
    %80 = vector.broadcast %cst_35 : f32 to vector<8x128xf32>
    %81 = arith.addf %79, %80 : vector<8x128xf32>
    %82 = tpu.reciprocal %81 {approx = true} : vector<8x128xf32> -> vector<8x128xf32>
    %cst_36 = arith.constant 0.318309873 : f32
    %83 = arith.mulf %6, %cst_36 : f32
    %84 = vector.broadcast %83 : f32 to vector<8x128xf32>
    %85 = arith.mulf %84, %82 : vector<8x128xf32>
    %86 = arith.mulf %85, %82 : vector<8x128xf32>
    %87 = vector.broadcast %8 : f32 to vector<8x128xf32>
    %88 = arith.mulf %61, %87 : vector<8x128xf32>
    %89 = vector.broadcast %7 : f32 to vector<8x128xf32>
    %90 = arith.addf %88, %89 : vector<8x128xf32>
    %91 = tpu.reciprocal %90 {approx = true} : vector<8x128xf32> -> vector<8x128xf32>
    %92 = arith.mulf %61, %91 : vector<8x128xf32>
    %93 = vector.broadcast %8 : f32 to vector<8x128xf32>
    %94 = arith.mulf %59, %93 : vector<8x128xf32>
    %95 = vector.broadcast %7 : f32 to vector<8x128xf32>
    %96 = arith.addf %94, %95 : vector<8x128xf32>
    %97 = tpu.reciprocal %96 {approx = true} : vector<8x128xf32> -> vector<8x128xf32>
    %98 = arith.mulf %59, %97 : vector<8x128xf32>
    %99 = arith.mulf %92, %98 : vector<8x128xf32>
    %cst_37 = arith.constant 1.000000e+00 : f32
    %100 = vector.broadcast %cst_37 : f32 to vector<8x128xf32>
    %101 = arith.subf %100, %68 : vector<8x128xf32>
    %102 = arith.mulf %101, %101 : vector<8x128xf32>
    %103 = arith.mulf %102, %102 : vector<8x128xf32>
    %104 = arith.mulf %103, %101 : vector<8x128xf32>
    %105 = arith.mulf %86, %99 : vector<8x128xf32>
    %cst_38 = arith.constant 4.000000e+00 : f32
    %106 = vector.broadcast %cst_38 : f32 to vector<8x128xf32>
    %107 = arith.mulf %106, %61 : vector<8x128xf32>
    %cst_39 = arith.constant 9.99999974E-5 : f32
    %108 = vector.broadcast %cst_39 : f32 to vector<8x128xf32>
    %109 = arith.addf %107, %108 : vector<8x128xf32>
    %110 = tpu.reciprocal %109 {approx = true} : vector<8x128xf32> -> vector<8x128xf32>
    %111 = arith.mulf %105, %110 : vector<8x128xf32>
    %112 = arith.mulf %111, %43 : vector<8x128xf32>
    %cst_40 = arith.constant 0.318309873 : f32
    %113 = vector.broadcast %cst_40 : f32 to vector<8x128xf32>
    %114 = arith.mulf %59, %113 : vector<8x128xf32>
    %115 = arith.mulf %114, %43 : vector<8x128xf32>
    %116 = vector.broadcast %0 : f32 to vector<8x128xf32>
    %117 = arith.mulf %116, %115 : vector<8x128xf32>
    %cst_41 = arith.constant 1.000000e+00 : f32
    %118 = arith.subf %cst_41, %3 : f32
    %119 = vector.broadcast %118 : f32 to vector<8x128xf32>
    %120 = arith.mulf %119, %104 : vector<8x128xf32>
    %121 = vector.broadcast %3 : f32 to vector<8x128xf32>
    %122 = arith.addf %121, %120 : vector<8x128xf32>
    %123 = arith.mulf %122, %112 : vector<8x128xf32>
    %124 = arith.addf %117, %123 : vector<8x128xf32>
    %c0_42 = arith.constant 0 : index
    %c0_43 = arith.constant 0 : index
    %c0_44 = arith.constant 0 : index
    %125 = vector.load %arg5[%c0_42, %c0_43, %c0_44] : memref<3x8x128xf32, #tpu.memory_space<vmem>>, vector<1x8x128xf32>
    %126 = vector.shape_cast %125 : vector<1x8x128xf32> to vector<8x128xf32>
    %127 = vector.shape_cast %124 : vector<8x128xf32> to vector<1x8x128xf32>
    tpu.vector_store %arg5[%c0_42, %c0_43, %c0_44], %127 {strides = array<i32>} : memref<3x8x128xf32, #tpu.memory_space<vmem>>, vector<1x8x128xf32>,
    %128 = vector.broadcast %1 : f32 to vector<8x128xf32>
    %129 = arith.mulf %128, %115 : vector<8x128xf32>
    %cst_45 = arith.constant 1.000000e+00 : f32
    %130 = arith.subf %cst_45, %4 : f32
    %131 = vector.broadcast %130 : f32 to vector<8x128xf32>
    %132 = arith.mulf %131, %104 : vector<8x128xf32>
    %133 = vector.broadcast %4 : f32 to vector<8x128xf32>
    %134 = arith.addf %133, %132 : vector<8x128xf32>
    %135 = arith.mulf %134, %112 : vector<8x128xf32>
    %136 = arith.addf %129, %135 : vector<8x128xf32>
    %c1_46 = arith.constant 1 : index
    %c0_47 = arith.constant 0 : index
    %c0_48 = arith.constant 0 : index
    %137 = vector.load %arg5[%c1_46, %c0_47, %c0_48] : memref<3x8x128xf32, #tpu.memory_space<vmem>>, vector<1x8x128xf32>
    %138 = vector.shape_cast %137 : vector<1x8x128xf32> to vector<8x128xf32>
    %139 = vector.shape_cast %136 : vector<8x128xf32> to vector<1x8x128xf32>
    tpu.vector_store %arg5[%c1_46, %c0_47, %c0_48], %139 {strides = array<i32>} : memref<3x8x128xf32, #tpu.memory_space<vmem>>, vector<1x8x128xf32>,
    %140 = vector.broadcast %2 : f32 to vector<8x128xf32>
    %141 = arith.mulf %140, %115 : vector<8x128xf32>
    %cst_49 = arith.constant 1.000000e+00 : f32
    %142 = arith.subf %cst_49, %5 : f32
    %143 = vector.broadcast %142 : f32 to vector<8x128xf32>
    %144 = arith.mulf %143, %104 : vector<8x128xf32>
    %145 = vector.broadcast %5 : f32 to vector<8x128xf32>
    %146 = arith.addf %145, %144 : vector<8x128xf32>
    %147 = arith.mulf %146, %112 : vector<8x128xf32>
    %148 = arith.addf %141, %147 : vector<8x128xf32>
    %c2_50 = arith.constant 2 : index
    %c0_51 = arith.constant 0 : index
    %c0_52 = arith.constant 0 : index
    %149 = vector.load %arg5[%c2_50, %c0_51, %c0_52] : memref<3x8x128xf32, #tpu.memory_space<vmem>>, vector<1x8x128xf32>
    %150 = vector.shape_cast %149 : vector<1x8x128xf32> to vector<8x128xf32>
    %151 = vector.shape_cast %148 : vector<8x128xf32> to vector<1x8x128xf32>
    tpu.vector_store %arg5[%c2_50, %c0_51, %c0_52], %151 {strides = array<i32>} : memref<3x8x128xf32, #tpu.memory_space<vmem>>, vector<1x8x128xf32>,
    %cst_53 = arith.constant 9.99999974E-5 : f32
    %152 = vector.broadcast %cst_53 : f32 to vector<8x128xf32>
    %153 = arith.maximumf %68, %152 : vector<8x128xf32>
    %cst_54 = arith.constant 4.000000e+00 : f32
    %154 = vector.broadcast %cst_54 : f32 to vector<8x128xf32>
    %155 = arith.mulf %154, %153 : vector<8x128xf32>
    %cst_55 = arith.constant 9.99999974E-5 : f32
    %156 = vector.broadcast %cst_55 : f32 to vector<8x128xf32>
    %157 = arith.maximumf %75, %156 : vector<8x128xf32>
    %158 = arith.mulf %155, %157 : vector<8x128xf32>
    %159 = tpu.reciprocal %158 {approx = true} : vector<8x128xf32> -> vector<8x128xf32>
    %160 = arith.mulf %86, %159 : vector<8x128xf32>
    %cst_56 = arith.constant 5.000000e-01 : f32
    %161 = vector.broadcast %cst_56 : f32 to vector<8x128xf32>
    %162 = arith.mulf %161, %160 : vector<8x128xf32>
    %cst_57 = arith.constant 5.000000e-01 : f32
    %163 = vector.broadcast %cst_57 : f32 to vector<8x128xf32>
    %164 = arith.mulf %163, %61 : vector<8x128xf32>
    %cst_58 = arith.constant 0.318309873 : f32
    %165 = vector.broadcast %cst_58 : f32 to vector<8x128xf32>
    %166 = arith.mulf %164, %165 : vector<8x128xf32>
    %167 = arith.addf %162, %166 : vector<8x128xf32>
    %168 = arith.mulf %167, %43 : vector<8x128xf32>
    %c0_59 = arith.constant 0 : index
    %c0_60 = arith.constant 0 : index
    %169 = vector.load %arg6[%c0_59, %c0_60] : memref<8x128xf32, #tpu.memory_space<vmem>>, vector<8x128xf32>
    tpu.vector_store %arg6[%c0_59, %c0_60], %168 {strides = array<i32>} : memref<8x128xf32, #tpu.memory_space<vmem>>, vector<8x128xf32>,
    return
  }
  func.func @transform_0(%arg0: i32) -> i32 {
    %c0_i32 = arith.constant 0 : i32
    %c0_i32_0 = arith.constant 0 : i32
    return %c0_i32 : i32
  }
  func.func @transform_1(%arg0: i32) -> (i32, i32, i32) {
    %c0_i32 = arith.constant 0 : i32
    %c0_i32_0 = arith.constant 0 : i32
    %c0_i32_1 = arith.constant 0 : i32
    return %c0_i32, %arg0, %c0_i32_0 : i32, i32, i32
  }
  func.func @transform_2(%arg0: i32) -> (i32, i32, i32) {
    %c0_i32 = arith.constant 0 : i32
    %c0_i32_0 = arith.constant 0 : i32
    %c0_i32_1 = arith.constant 0 : i32
    return %c0_i32, %arg0, %c0_i32_0 : i32, i32, i32
  }
  func.func @transform_3(%arg0: i32) -> (i32, i32, i32) {
    %c0_i32 = arith.constant 0 : i32
    %c0_i32_0 = arith.constant 0 : i32
    %c0_i32_1 = arith.constant 0 : i32
    return %c0_i32, %arg0, %c0_i32_0 : i32, i32, i32
  }
  func.func @transform_4(%arg0: i32) -> (i32, i32, i32) {
    %c0_i32 = arith.constant 0 : i32
    %c0_i32_0 = arith.constant 0 : i32
    %c0_i32_1 = arith.constant 0 : i32
    return %c0_i32, %arg0, %c0_i32_0 : i32, i32, i32
  }
  func.func @transform_5(%arg0: i32) -> (i32, i32) {
    %c0_i32 = arith.constant 0 : i32
    %c0_i32_0 = arith.constant 0 : i32
    return %arg0, %c0_i32 : i32, i32
  }
}

</mosaic_0001>

<llo_original>
// kernel: tpu_custom_call.1
$region0: #{tpu_custom_call.1}
  #allocation0 [shape = 'u32[]', space=smem, size = 0x4, offset = 0x4, fixed_abs, tag = 'smem constant byte address 0x4 - core index']
  #allocation1 [shape = 'u32[144,128]{1,0:T(1,128)}', space=vmem, size = 0x12000, scoped, tag = 'internal scratch']
  %s0 = inlined_call_operand.hbm [shape: f32[8], index: 0, kind: input, shape index: {}]
  %s1 = inlined_call_operand.hbm [shape: f32[3,8,128], index: 1, kind: input, shape index: {}]
  %s2 = inlined_call_operand.hbm [shape: f32[3,8,128], index: 2, kind: input, shape index: {}]
  %s3 = inlined_call_operand.hbm [shape: f32[3,8,128], index: 3, kind: input, shape index: {}]
  %s4 = inlined_call_operand.hbm [shape: f32[3,8,128], index: 4, kind: output, shape index: {0}]
  %s5 = inlined_call_operand.hbm [shape: f32[8,128], index: 5, kind: output, shape index: {1}]
  %6 = xla_tuple %s4, %s5
  %s7 = sld [smem:[#allocation0]]
  $region50: #{tpu_custom_call.1} parent=0
    _
  %s9 = ssub.s32 1, %s7
  %s10 = scalar_select 0, %s9, %s7
  $region1: #{tpu_custom_call.1} parent=0
    #allocation2 [shape = 'u8[512]{0}', space=smem, size = 0x200, scoped, tag = 'input window, operand 0, single buffered']
    #allocation3 [shape = 's32[1]{0}', space=sflag, size = 0x4, scoped, tag = 'scoped memory for tpu_custom_call.1']
    #allocation4 [shape = 's32[1]{0}', space=sflag, size = 0x4, scoped, tag = 'scoped memory for tpu_custom_call.1']
    #allocation5 [shape = 's32[1]{0}', space=sflag, size = 0x4, scoped, tag = 'scoped memory for tpu_custom_call.1']
    #allocation6 [shape = 'u8[12288]{0}', space=vmem, size = 0x3000, scoped, tag = 'input window, operand 1, single buffered']
    #allocation7 [shape = 'u8[12288]{0}', space=vmem, size = 0x3000, scoped, tag = 'input window, operand 2, single buffered']
    #allocation8 [shape = 's32[1]{0}', space=sflag, size = 0x4, scoped, tag = 'scoped memory for tpu_custom_call.1']
    #allocation9 [shape = 'u8[12288]{0}', space=vmem, size = 0x3000, scoped, tag = 'input window, operand 3, single buffered']
    #allocation10 [shape = 'u8[12288]{0}', space=vmem, size = 0x3000, scoped, tag = 'output window, operand 0, single buffered']
    #allocation11 [shape = 'u8[4096]{0}', space=vmem, size = 0x1000, scoped, tag = 'output window, operand 1, single buffered']
    #allocation12 [shape = 's32[1]{0}', space=sflag, size = 0x4, scoped, tag = 'scoped memory for tpu_custom_call.1']
    %11 = vsyncpa [#allocation5], 0
    %12 = vsyncpa [#allocation3], 0
    %13 = vsyncpa [#allocation8], 0
    %14 = vsyncpa [#allocation4], 0
    %15 = vsyncpa [#allocation12], 0
    // Predicated region
    $region2: #{tpu_custom_call.1} parent=1 // pred_check
      _
    $region3: #{tpu_custom_call.1} parent=1 // pred_check_branch
      %17 = sbr.rel (0) target = $region5
    $region4: #{tpu_custom_call.1} parent=1 // pred_region
      %s19 = ssub.s32 16, 16
      %20 = vsyncadd [#allocation5], %s19
      %23 = dma.hbm_to_smem %s0, 16, [#allocation2], [#allocation5]
    $region5: #{tpu_custom_call.1} parent=1 // pred_fallthru
      _
    // Predicated region
    $region6: #{tpu_custom_call.1} parent=1 // pred_check
      _
    $region7: #{tpu_custom_call.1} parent=1 // pred_check_branch
      %25 = sbr.rel (0) target = $region9
    $region8: #{tpu_custom_call.1} parent=1 // pred_region
      %s27 = ssub.s32 384, 384
      %28 = vsyncadd [#allocation3], %s27
      %s29 = sshll.u32 [#allocation6], 4
      %s30 = int_to_ptr.vmem [resolvable:$true] %s29
      %35 = dma.hbm_to_vmem [thread:$0]  %s1, 384, %s30, [#allocation3], 128, 128, 8
    $region9: #{tpu_custom_call.1} parent=1 // pred_fallthru
      _
    // Predicated region
    $region10: #{tpu_custom_call.1} parent=1 // pred_check
      _
    $region11: #{tpu_custom_call.1} parent=1 // pred_check_branch
      %37 = sbr.rel (0) target = $region13
    $region12: #{tpu_custom_call.1} parent=1 // pred_region
      %s39 = ssub.s32 384, 384
      %40 = vsyncadd [#allocation8], %s39
      %s41 = sshll.u32 [#allocation7], 4
      %s42 = int_to_ptr.vmem [resolvable:$true] %s41
      %47 = dma.hbm_to_vmem [thread:$0]  %s2, 384, %s42, [#allocation8], 128, 128, 8
    $region13: #{tpu_custom_call.1} parent=1 // pred_fallthru
      _
    // Predicated region
    $region14: #{tpu_custom_call.1} parent=1 // pred_check
      _
    $region15: #{tpu_custom_call.1} parent=1 // pred_check_branch
      %49 = sbr.rel (0) target = $region17
    $region16: #{tpu_custom_call.1} parent=1 // pred_region
      %s51 = ssub.s32 384, 384
      %52 = vsyncadd [#allocation8], %s51
      %s53 = sshll.u32 [#allocation9], 4
      %s54 = int_to_ptr.vmem [resolvable:$true] %s53
      %59 = dma.hbm_to_vmem [thread:$0]  %s3, 384, %s54, [#allocation8], 128, 128, 8
    $region17: #{tpu_custom_call.1} parent=1 // pred_fallthru
      _
    // Predicated region
    $region18: #{tpu_custom_call.1} parent=1 // pred_check
      _
    $region19: #{tpu_custom_call.1} parent=1 // pred_check_branch
      %61 = sbr.rel (0) target = $region21
    $region20: #{tpu_custom_call.1} parent=1 // pred_region
      %62 = dma.done [#allocation5], 16
    $region21: #{tpu_custom_call.1} parent=1 // pred_fallthru
      _
    // Predicated region
    $region22: #{tpu_custom_call.1} parent=1 // pred_check
      _
    $region23: #{tpu_custom_call.1} parent=1 // pred_check_branch
      %64 = sbr.rel (0) target = $region25
    $region24: #{tpu_custom_call.1} parent=1 // pred_region
      %65 = dma.done [#allocation3], 384
    $region25: #{tpu_custom_call.1} parent=1 // pred_fallthru
      _
    // Predicated region
    $region26: #{tpu_custom_call.1} parent=1 // pred_check
      _
    $region27: #{tpu_custom_call.1} parent=1 // pred_check_branch
      %67 = sbr.rel (0) target = $region29
    $region28: #{tpu_custom_call.1} parent=1 // pred_region
      %68 = dma.done [#allocation8], 384
    $region29: #{tpu_custom_call.1} parent=1 // pred_fallthru
      _
    // Predicated region
    $region30: #{tpu_custom_call.1} parent=1 // pred_check
      _
    $region31: #{tpu_custom_call.1} parent=1 // pred_check_branch
      %70 = sbr.rel (0) target = $region33
    $region32: #{tpu_custom_call.1} parent=1 // pred_region
      %71 = dma.done [#allocation8], 384
    $region33: #{tpu_custom_call.1} parent=1 // pred_fallthru
      _
    %72 = sfence
    %s73 = sld [smem:[#allocation2]]
    %s74 = sld [smem:[#allocation2 + $0x1]]
    %s75 = sld [smem:[#allocation2 + $0x2]]
    %s76 = sld [smem:[#allocation2 + $0x3]]
    %s77 = sld [smem:[#allocation2 + $0x4]]
    %s78 = sld [smem:[#allocation2 + $0x5]]
    %s79 = sld [smem:[#allocation2 + $0x6]]
    %s80 = sld [smem:[#allocation2 + $0x7]]
    %s81 = ssub.f32 1.0, %s80
    %v82 = vld [vmem:[#allocation6] sm:$0xff]
    %s83 = scalar_lea.vmem [#allocation6], 8
    %v84 = vld [vmem:[%s83] sm:$0xff]
    %s85 = scalar_lea.vmem [#allocation6], 16
    %v86 = vld [vmem:[%s85] sm:$0xff]
    %v87 = vld [vmem:[#allocation7] sm:$0xff]
    %s88 = scalar_lea.vmem [#allocation7], 8
    %v89 = vld [vmem:[%s88] sm:$0xff]
    %s90 = scalar_lea.vmem [#allocation7], 16
    %v91 = vld [vmem:[%s90] sm:$0xff]
    %v92 = vld [vmem:[#allocation9] sm:$0xff]
    %s93 = scalar_lea.vmem [#allocation9], 8
    %v94 = vld [vmem:[%s93] sm:$0xff]
    %s95 = scalar_lea.vmem [#allocation9], 16
    %v96 = vld [vmem:[%s95] sm:$0xff]
    %v97 = vmul.f32 %v82, %v92
    %v98 = vmul.f32 %v84, %v94
    %v99 = vadd.f32 %v97, %v98
    %v100 = vmul.f32 %v86, %v96
    %v101 = vadd.f32 %v99, %v100
    %v102 = vmul.f32 %v87, %v92
    %v103 = vmul.f32 %v89, %v94
    %v104 = vadd.f32 %v102, %v103
    %v105 = vmul.f32 %v91, %v96
    %v106 = vadd.f32 %v104, %v105
    %vm107 = vcmp.gt.f32.partialorder %v101, 0.0
    %vm108 = vcmp.gt.f32.partialorder %v106, 0.0
    %vm109 = vmand %vm107, %vm108
    %v110 = vsel %vm109, 1, 0
    %v111 = vcvt.s32.f32 %v110
    %v112 = vadd.f32 %v82, %v87
    %v113 = vadd.f32 %v84, %v89
    %v114 = vadd.f32 %v86, %v91
    %v115 = vmul.f32 %v112, %v112
    %v116 = vmul.f32 %v113, %v113
    %v117 = vadd.f32 %v115, %v116
    %v118 = vmul.f32 %v114, %v114
    %v119 = vadd.f32 %v117, %v118
    %v120 = vmax.f32 %v119, 1e-24
    %v121 = vrsqrt.pop %v120
    %v122 = vmul.f32 %v112, %v121
    %v123 = vmul.f32 %v113, %v121
    %v124 = vmul.f32 %v114, %v121
    %v125 = vmax.f32 %v101, 0.0
    %v126 = vmax.f32 %v106, 0.0
    %v127 = vmul.f32 %v87, %v122
    %v128 = vmul.f32 %v89, %v123
    %v129 = vadd.f32 %v127, %v128
    %v130 = vmul.f32 %v91, %v124
    %v131 = vadd.f32 %v129, %v130
    %v132 = vmax.f32 %v131, 0.0
    %v133 = vmul.f32 %v92, %v122
    %v134 = vmul.f32 %v94, %v123
    %v135 = vadd.f32 %v133, %v134
    %v136 = vmul.f32 %v96, %v124
    %v137 = vadd.f32 %v135, %v136
    %v138 = vmax.f32 %v137, 0.0
    %v139 = vmul.f32 %v138, %v138
    %s140 = ssub.f32 %s79, 1.0
    %v141 = vstv %s140
    %v142 = vmul.f32 %v139, %v141
    %v143 = vadd.f32 %v142, 1.0
    %v144 = vrcp.pop %v143
    %s145 = smul.f32 %s79, 0.31830987
    %v146 = vstv %s145
    %v147 = vmul.f32 %v146, %v144
    %v148 = vmul.f32 %v147, %v144
    %v149 = vstv %s81
    %v150 = vmul.f32 %v126, %v149
    %v151 = vstv %s80
    %v152 = vadd.f32 %v150, %v151
    %v153 = vrcp.pop %v152
    %v154 = vmul.f32 %v126, %v153
    %v155 = vmul.f32 %v125, %v149
    %v156 = vadd.f32 %v155, %v151
    %v157 = vrcp.pop %v156
    %v158 = vmul.f32 %v125, %v157
    %v159 = vmul.f32 %v154, %v158
    %v160 = vsub.f32 1.0, %v132
    %v161 = vmul.f32 %v160, %v160
    %v162 = vmul.f32 %v161, %v161
    %v163 = vmul.f32 %v162, %v160
    %v164 = vmul.f32 %v148, %v159
    %v165 = vmul.f32 %v126, 4.0
    %v166 = vadd.f32 %v165, 0.0001
    %v167 = vrcp.pop %v166
    %v168 = vmul.f32 %v164, %v167
    %v169 = vmul.f32 %v168, %v111
    %v170 = vmul.f32 %v125, 0.31830987
    %v171 = vmul.f32 %v170, %v111
    %v172 = vstv %s73
    %v173 = vmul.f32 %v172, %v171
    %s174 = ssub.f32 1.0, %s76
    %v175 = vstv %s174
    %v176 = vmul.f32 %v175, %v163
    %v177 = vstv %s76
    %v178 = vadd.f32 %v177, %v176
    %v179 = vmul.f32 %v178, %v169
    %v180 = vadd.f32 %v173, %v179
    %181 = vst [vmem:[#allocation10] sm:$0xff] %v180
    %v182 = vstv %s74
    %v183 = vmul.f32 %v182, %v171
    %s184 = ssub.f32 1.0, %s77
    %v185 = vstv %s184
    %v186 = vmul.f32 %v185, %v163
    %v187 = vstv %s77
    %v188 = vadd.f32 %v187, %v186
    %v189 = vmul.f32 %v188, %v169
    %v190 = vadd.f32 %v183, %v189
    %s191 = scalar_lea.vmem [#allocation10], 8
    %192 = vst [vmem:[%s191] sm:$0xff] %v190
    %v193 = vstv %s75
    %v194 = vmul.f32 %v193, %v171
    %s195 = ssub.f32 1.0, %s78
    %v196 = vstv %s195
    %v197 = vmul.f32 %v196, %v163
    %v198 = vstv %s78
    %v199 = vadd.f32 %v198, %v197
    %v200 = vmul.f32 %v199, %v169
    %v201 = vadd.f32 %v194, %v200
    %s202 = scalar_lea.vmem [#allocation10], 16
    %203 = vst [vmem:[%s202] sm:$0xff] %v201
    %v204 = vmax.f32 %v132, 0.0001
    %v205 = vmul.f32 %v204, 4.0
    %v206 = vmax.f32 %v138, 0.0001
    %v207 = vmul.f32 %v205, %v206
    %v208 = vrcp.pop %v207
    %v209 = vmul.f32 %v148, %v208
    %v210 = vmul.f32 %v209, 0.5
    %v211 = vmul.f32 %v126, 0.5
    %v212 = vmul.f32 %v211, 0.31830987
    %v213 = vadd.f32 %v210, %v212
    %v214 = vmul.f32 %v213, %v111
    %215 = vst [vmem:[#allocation11] sm:$0xff] %v214
    // Predicated region
    $region34: #{tpu_custom_call.1} parent=1 // pred_check
      _
    $region35: #{tpu_custom_call.1} parent=1 // pred_check_branch
      %217 = sbr.rel (0) target = $region37
    $region36: #{tpu_custom_call.1} parent=1 // pred_region
      %s219 = ssub.s32 384, 384
      %220 = vsyncadd [#allocation4], %s219
      %s221 = sshll.u32 [#allocation10], 4
      %s222 = int_to_ptr.vmem [resolvable:$true] %s221
      %227 = dma.vmem_to_hbm [thread:$0]  %s222, 384, %s4, [#allocation4], 128, 128, 8
    $region37: #{tpu_custom_call.1} parent=1 // pred_fallthru
      _
    // Predicated region
    $region38: #{tpu_custom_call.1} parent=1 // pred_check
      _
    $region39: #{tpu_custom_call.1} parent=1 // pred_check_branch
      %229 = sbr.rel (0) target = $region41
    $region40: #{tpu_custom_call.1} parent=1 // pred_region
      %s231 = ssub.s32 128, 128
      %232 = vsyncadd [#allocation12], %s231
      %s234 = sshll.u32 [#allocation11], 4
      %s235 = int_to_ptr.vmem [resolvable:$true] %s234
      %237 = dma.vmem_to_hbm [thread:$0]  %s235, 128, %s5, [#allocation12]
    $region41: #{tpu_custom_call.1} parent=1 // pred_fallthru
      _
    // Predicated region
    $region42: #{tpu_custom_call.1} parent=1 // pred_check
      _
    $region43: #{tpu_custom_call.1} parent=1 // pred_check_branch
      %239 = sbr.rel (0) target = $region45
    $region44: #{tpu_custom_call.1} parent=1 // pred_region
      %240 = dma.done [#allocation4], 384
    $region45: #{tpu_custom_call.1} parent=1 // pred_fallthru
      _
    // Predicated region
    $region46: #{tpu_custom_call.1} parent=1 // pred_check
      _
    $region47: #{tpu_custom_call.1} parent=1 // pred_check_branch
      %242 = sbr.rel (0) target = $region49
    $region48: #{tpu_custom_call.1} parent=1 // pred_region
      %243 = dma.done [#allocation12], 128
    $region49: #{tpu_custom_call.1} parent=1 // pred_fallthru
      _
    %244 = vsyncpa [#allocation3], 1
    %245 = vsyncpa [#allocation8], 1
    %246 = vsyncpa [#allocation4], 1
    %247 = vsyncpa [#allocation12], 1
    %248 = vsyncpa [#allocation5], 1

</llo_original>
